<compile_context>
chip_gen: v7x
topology: tpu7x:2x2x1
jax: 0.10.0
libtpu: 0.0.40
codegen_flags: <defaults>
</compile_context>

<pallas_src>
import functools

import numpy as np
import jax
import jax.numpy as jnp
from jax.experimental import pallas as pl
from jax.experimental.pallas import tpu as pltpu


def _round_up(x, m):
    return ((x + m - 1) // m) * m


# ----------------------------------------------------------------------------
# Pallas kernel
# ----------------------------------------------------------------------------
def _istft_kernel(x_ref, w_ref, invenv_ref, out_ref, work_ref, *,
                  hop, R, Tc, P):
    """One (batch, frame-chunk) grid step.

    x_ref      [1, Tc, n_fft]    bf16  fused [re | im[1:F-1]] spectrum chunk
    w_ref      [n_fft, n_fft]    bf16  fused, windowed irfft basis
    invenv_ref [Tc, hop]         f32   1 / squared-window OLA envelope (rows)
    out_ref    [1, Tc, hop]      f32   normalized overlap-added output rows
    work_ref   [P + Tc, n_fft]   f32   persistent frame buffer; rows [0, P)
                                       carry the previous chunk's tail frames
    """
    t = pl.program_id(1)

    # Reset the cross-chunk carry at the start of every batch element,
    # otherwise shift last chunk's final P frames into the carry rows.
    @pl.when(t == 0)
    def _():
        work_ref[0:P, :] = jnp.zeros((P, work_ref.shape[1]), work_ref.dtype)

    @pl.when(t > 0)
    def _():
        work_ref[0:P, :] = work_ref[Tc:Tc + P, :]

    # irfft of all frames in the chunk as ONE K = n_fft MXU matmul
    # (hann window + onesided scaling folded into w_ref), f32 accumulation,
    # written directly into the persistent work buffer.
    work_ref[P:P + Tc, :] = jnp.dot(x_ref[0], w_ref[...],
                                    preferred_element_type=jnp.float32)

    # Overlap-add: output row k (hop samples) = sum_j frames[k - j, j*hop:(j+1)*hop].
    # Shifted VMEM slices + VPU adds; no dense shift matmul, no O(T^2) operand.
    ola = work_ref[P:P + Tc, 0:hop]                                  # j = 0 term
    for j in range(1, R):
        ola = ola + work_ref[P - j:P - j + Tc, j * hop:(j + 1) * hop]

    out_ref[0] = ola * invenv_ref[...]


# ----------------------------------------------------------------------------
# Deterministic "parameters" (window / fused basis / envelope), lru-cached.
# ----------------------------------------------------------------------------
def _hann_window(win_length):
    n = np.arange(win_length, dtype=np.float64)
    return 0.5 - 0.5 * np.cos(2.0 * np.pi * n / win_length)    # periodic hann


def _make_fused_basis(n_fft, win_length):
    """W [n_fft, n_fft] s.t. [re | im[1:F-1]] @ W == irfft(spec, n_fft) * window."""
    F = n_fft // 2 + 1
    win = _hann_window(win_length)
    pad_l = (n_fft - win_length) // 2
    win_p = np.zeros(n_fft, dtype=np.float64)
    win_p[pad_l:pad_l + win_length] = win
    f = np.arange(F, dtype=np.float64)[:, None]
    n = np.arange(n_fft, dtype=np.float64)[None, :]
    ang = 2.0 * np.pi * f * n / n_fft
    scale = np.full((F, 1), 2.0)
    scale[0, 0] = 1.0
    if n_fft % 2 == 0:
        scale[-1, 0] = 1.0
    cw = (scale * np.cos(ang) / n_fft) * win_p[None, :]          # [F, n_fft]
    sw = (-scale * np.sin(ang) / n_fft) * win_p[None, :]         # [F, n_fft]
    # sw rows 0 and F-1 (DC / Nyquist sine) are identically zero, so the
    # imaginary DC/Nyquist columns are dropped -> exact K = n_fft contraction.
    W = np.concatenate([cw, sw[1:F - 1]], axis=0)                # [n_fft, n_fft]
    return W, win_p


def _inv_envelope(n_fft, hop, win_p, n_frames):
    Lfull = n_fft + (n_frames - 1) * hop
    env = np.zeros(Lfull, dtype=np.float64)
    wsq = win_p ** 2
    for t in range(n_frames):
        env[t * hop:t * hop + n_fft] += wsq
    inv = np.where(env > 1e-11, 1.0 / np.maximum(env, 1e-11), 0.0)
    return inv.astype(np.float32)


@functools.lru_cache(maxsize=16)
def _get_constants(n_fft, win_length, hop, n_frames, max_chunk):
    """Device-resident constants + tiling, cached per configuration."""
    R = n_fft // hop
    rows = n_frames + R - 1                    # total OLA rows (of `hop` samples)
    max_chunk = max(8, _round_up(max_chunk, 8))
    Tc = min(max_chunk, _round_up(rows, 8))    # frame rows per grid step
    nT = pl.cdiv(rows, Tc)
    T_pad = nT * Tc
    P = _round_up(max(R - 1, 1), 8)            # carried frames, sublane aligned

    W, win_p = _make_fused_basis(n_fft, win_length)
    invenv = _inv_envelope(n_fft, hop, win_p, n_frames).reshape(rows, hop)
    invenv_pad = np.zeros((T_pad, hop), np.float32)
    invenv_pad[:rows] = invenv

    return (jnp.asarray(W, dtype=jnp.bfloat16),
            jnp.asarray(invenv_pad, dtype=jnp.float32),
            Tc, nT, T_pad, P)


# ----------------------------------------------------------------------------
# Wrapper (STFTDecoder.forward equivalent)
# ----------------------------------------------------------------------------
def stft_decoder_forward(spec, ilens, *, n_fft=512, hop_length=128,
                         win_length=None, spec_transform_type=None,
                         output_length=None, max_frames_per_chunk=1024):
    """JAX/Pallas equivalent of STFTDecoder.forward (default configuration)."""
    if not jnp.iscomplexobj(spec):
        raise TypeError("Only complex spectra are supported (as in STFTDecoder).")
    win_length = win_length if win_length else n_fft
    assert n_fft % hop_length == 0, "kernel assumes hop divides n_fft"
    hop = hop_length
    R = n_fft // hop

    # spec_back: default spec_transform_type=None is the identity.
    # TODO(synk): 'exponent' / 'log' spec_back transforms not implemented
    # (module default is None, which is a no-op).
    del spec_transform_type

    bs = spec.shape[0]
    multi_channel = spec.ndim == 4
    if multi_channel:                      # [B, T, C, F] -> [B*C, T, F]
        _, T, C, F = spec.shape
        spec = jnp.transpose(spec, (0, 2, 1, 3)).reshape(-1, T, F)
    B, T, F = spec.shape
    assert F == n_fft // 2 + 1 and 2 * F - 2 == n_fft

    W, invenv, Tc, nT, T_pad, P = _get_constants(
        n_fft, win_length, hop, T, max_frames_per_chunk)
    assert Tc >= P, "frame chunk must cover the OLA carry window"

    # Fuse real/imag into one exact K = n_fft contraction operand, bf16 inputs.
    re = jnp.real(spec)
    im = jnp.imag(spec)
    x = jnp.concatenate([re, im[..., 1:F - 1]], axis=-1).astype(jnp.bfloat16)
    x = jnp.pad(x, ((0, 0), (0, T_pad - T), (0, 0)))            # [B, T_pad, n_fft]

    kernel = functools.partial(_istft_kernel, hop=hop, R=R, Tc=Tc, P=P)

    out = pl.pallas_call(
        kernel,
        out_shape=jax.ShapeDtypeStruct((B, T_pad, hop), jnp.float32),
        grid_spec=pltpu.PrefetchScalarGridSpec(
            num_scalar_prefetch=0,
            grid=(B, nT),
            in_specs=[
                pl.BlockSpec((1, Tc, n_fft), lambda b, t: (b, t, 0)),   # spectrum chunk
                pl.BlockSpec((n_fft, n_fft), lambda b, t: (0, 0)),      # fused basis
                pl.BlockSpec((Tc, hop), lambda b, t: (t, 0)),           # 1/envelope
            ],
            out_specs=pl.BlockSpec((1, Tc, hop), lambda b, t: (b, t, 0)),
            scratch_shapes=[pltpu.VMEM((P + Tc, n_fft), jnp.float32)],  # frames + carry
        ),
        compiler_params=pltpu.CompilerParams(
            dimension_semantics=("parallel", "arbitrary"),
            vmem_limit_bytes=32 * 1024 * 1024),
    )(x, W, invenv)

    # Glue: center trim (center=True removes n_fft//2 on each side) and crop
    # to length, as torch.istft(..., length=ilens.max()) does.
    full = out.reshape(B, T_pad * hop)
    start = n_fft // 2
    if output_length is None:
        # TODO(synk): int(ilens.max()) forces a host sync and blocks jitting the
        # wrapper; pass output_length= explicitly for a fully traceable path.
        output_length = int(ilens.max())
    wav = full[:, start:start + output_length]

    if multi_channel:                      # [B*C, L] -> [B, L, C]
        wav = jnp.transpose(wav.reshape(bs, -1, wav.shape[1]), (0, 2, 1))
    return wav, ilens


# ----------------------------------------------------------------------------
# Pure-numpy reference (same iSTFT algorithm) for a correctness check
# ----------------------------------------------------------------------------
def _reference_istft(spec_np, n_fft, hop, length):
    B, T, F = spec_np.shape
    _, win_p = _make_fused_basis(n_fft, n_fft)
    frames = np.fft.irfft(spec_np, n=n_fft, axis=-1) * win_p[None, None, :]
    Lfull = n_fft + (T - 1) * hop
    sig = np.zeros((B, Lfull))
    env = np.zeros(Lfull)
    wsq = win_p ** 2
    for t in range(T):
        sig[:, t * hop:t * hop + n_fft] += frames[:, t]
        env[t * hop:t * hop + n_fft] += wsq
    inv = np.where(env > 1e-11, 1.0 / np.maximum(env, 1e-11), 0.0)
    sig = sig * inv[None, :]
    start = n_fft // 2
    return sig[:, start:start + length].astype(np.float32)


if __name__ == "__main__":
    n_fft, hop = 512, 128
    F = n_fft // 2 + 1

    def _make_spec(key, shape):
        kr, ki = jax.random.split(key)
        re = jax.random.normal(kr, shape, jnp.float32)
        im = jax.random.normal(ki, shape, jnp.float32)
        # DC / Nyquist bins of a onesided spectrum of a real signal are real.
        im = im.at[..., 0].set(0.0).at[..., -1].set(0.0)
        return re + 1j * im                            # complex64

    def _run_case(B, T, max_chunk, use_output_length=False):
        spec = _make_spec(jax.random.PRNGKey(0), (B, T, F))
        length = (T - 1) * hop
        ilens = jnp.array([length] + [length - 200] * (B - 1), dtype=jnp.int32)

        wav, wav_lens = stft_decoder_forward(
            spec, ilens, n_fft=n_fft, hop_length=hop,
            max_frames_per_chunk=max_chunk,
            output_length=length if use_output_length else None)
        wav = jax.block_until_ready(wav)

        ref = _reference_istft(np.asarray(spec), n_fft, hop, length)
        assert wav.shape == ref.shape, (wav.shape, ref.shape)
        err = np.max(np.abs(np.asarray(wav) - ref))
        assert np.allclose(np.asarray(wav), ref, atol=1e-2, rtol=1e-2), (
            "max abs err = %g" % err)
        assert np.array_equal(np.asarray(wav_lens), np.asarray(ilens))

    def _run_multichannel_case(B, C, T):
        spec = _make_spec(jax.random.PRNGKey(0), (B, T, C, F))
        length = (T - 1) * hop
        ilens = jnp.full((B,), length, dtype=jnp.int32)

        wav, wav_lens = stft_decoder_forward(
            spec, ilens, n_fft=n_fft, hop_length=hop, output_length=length)
        wav = jax.block_until_ready(wav)                       # [B, L, C]

        flat = np.asarray(jnp.transpose(spec, (0, 2, 1, 3)).reshape(B * C, T, F))
        ref = _reference_istft(flat, n_fft, hop, length)       # [B*C, L]
        ref = np.transpose(ref.reshape(B, C, -1), (0, 2, 1))   # [B, L, C]
        assert wav.shape == ref.shape, (wav.shape, ref.shape)
        err = np.max(np.abs(np.asarray(wav) - ref))
        assert np.allclose(np.asarray(wav), ref, atol=1e-2, rtol=1e-2), (
            "max abs err = %g" % err)
        assert np.array_equal(np.asarray(wav_lens), np.asarray(ilens))

    _run_case(B=2, T=12, max_chunk=1024)                       # single frame-chunk
    _run_case(B=2, T=40, max_chunk=16, use_output_length=True) # multi-chunk OLA carry
    _run_multichannel_case(B=2, C=2, T=10)                     # [B, T, C, F] path

    print("KERNEL_OK")
</pallas_src>

<mosaic_0001>
module attributes {stable_mosaic.version = 11 : i64} {
  func.func @_istft_kernel(%arg0: i32, %arg1: i32, %arg2: memref<1x16x512xbf16, #tpu.memory_space<vmem>>, %arg3: memref<512x512xbf16, #tpu.memory_space<vmem>>, %arg4: memref<16x128xf32, #tpu.memory_space<vmem>>, %arg5: memref<1x16x128xf32, #tpu.memory_space<vmem>>, %arg6: memref<24x512xf32, #tpu.memory_space<vmem>>) attributes {dimension_semantics = [#tpu.dimension_semantics<parallel>, #tpu.dimension_semantics<arbitrary>], iteration_bounds = array<i64: 2, 1>, scalar_prefetch = 0 : i64, scratch_operands = 1 : i64, tpu.core_type = #tpu.core_type<tc>, window_params = [{transform_indices = @transform_0, window_bounds = array<i64: 1, 16, 512>}, {pipeline_mode = #tpu.pipeline_mode<synchronous>, transform_indices = @transform_1, window_bounds = array<i64: 512, 512>}, {transform_indices = @transform_2, window_bounds = array<i64: 16, 128>}, {transform_indices = @transform_3, window_bounds = array<i64: 1, 16, 128>}]} {
    %c0_i32 = arith.constant 0 : i32
    %0 = arith.cmpi eq, %arg1, %c0_i32 : i32
    %1 = arith.extui %0 : i1 to i32
    %c0_i32_0 = arith.constant 0 : i32
    %2 = arith.cmpi ne, %1, %c0_i32_0 : i32
    scf.if %2 {
      %cst_15 = arith.constant 0.000000e+00 : f32
      %23 = vector.broadcast %cst_15 : f32 to vector<8x512xf32>
      %c0_16 = arith.constant 0 : index
      %c0_17 = arith.constant 0 : index
      %24 = vector.load %arg6[%c0_16, %c0_17] : memref<24x512xf32, #tpu.memory_space<vmem>>, vector<8x512xf32>
      tpu.vector_store %arg6[%c0_16, %c0_17], %23 {strides = array<i32>} : memref<24x512xf32, #tpu.memory_space<vmem>>, vector<8x512xf32>,
    } else {
    }
    %c0_i32_1 = arith.constant 0 : i32
    %3 = arith.cmpi sgt, %arg1, %c0_i32_1 : i32
    %4 = arith.extui %3 : i1 to i32
    %c0_i32_2 = arith.constant 0 : i32
    %5 = arith.cmpi ne, %4, %c0_i32_2 : i32
    scf.if %5 {
      %c16 = arith.constant 16 : index
      %c0_15 = arith.constant 0 : index
      %23 = vector.load %arg6[%c16, %c0_15] : memref<24x512xf32, #tpu.memory_space<vmem>>, vector<8x512xf32>
      %c0_16 = arith.constant 0 : index
      %c0_17 = arith.constant 0 : index
      %24 = vector.load %arg6[%c0_16, %c0_17] : memref<24x512xf32, #tpu.memory_space<vmem>>, vector<8x512xf32>
      tpu.vector_store %arg6[%c0_16, %c0_17], %23 {strides = array<i32>} : memref<24x512xf32, #tpu.memory_space<vmem>>, vector<8x512xf32>,
    } else {
    }
    %c0 = arith.constant 0 : index
    %c0_3 = arith.constant 0 : index
    %c0_4 = arith.constant 0 : index
    %6 = vector.load %arg2[%c0, %c0_3, %c0_4] : memref<1x16x512xbf16, #tpu.memory_space<vmem>>, vector<1x16x512xbf16>
    %7 = vector.shape_cast %6 : vector<1x16x512xbf16> to vector<16x512xbf16>
    %c0_5 = arith.constant 0 : index
    %c0_6 = arith.constant 0 : index
    %8 = vector.load %arg3[%c0_5, %c0_6] : memref<512x512xbf16, #tpu.memory_space<vmem>>, vector<512x512xbf16>
    %cst = arith.constant dense<0.000000e+00> : vector<16x512xf32>
    %9 = tpu.matmul %7, %8, %cst {dimension_numbers = #tpu.dot_dimension_numbers<[1], [0], [0], [1], [0, 0, 1, 1], [], []>} : vector<16x512xbf16>, vector<512x512xbf16>, vector<16x512xf32> -> vector<16x512xf32>
    %c8 = arith.constant 8 : index
    %c0_7 = arith.constant 0 : index
    %10 = vector.load %arg6[%c8, %c0_7] : memref<24x512xf32, #tpu.memory_space<vmem>>, vector<16x512xf32>
    tpu.vector_store %arg6[%c8, %c0_7], %9 {strides = array<i32>} : memref<24x512xf32, #tpu.memory_space<vmem>>, vector<16x512xf32>,
    %c8_8 = arith.constant 8 : index
    %c0_9 = arith.constant 0 : index
    %11 = vector.load %arg6[%c8_8, %c0_9] : memref<24x512xf32, #tpu.memory_space<vmem>>, vector<16x128xf32>
    %c7 = arith.constant 7 : index
    %c128 = arith.constant 128 : index
    %12 = vector.load %arg6[%c7, %c128] : memref<24x512xf32, #tpu.memory_space<vmem>>, vector<16x128xf32>
    %13 = arith.addf %11, %12 : vector<16x128xf32>
    %c6 = arith.constant 6 : index
    %c256 = arith.constant 256 : index
    %14 = vector.load %arg6[%c6, %c256] : memref<24x512xf32, #tpu.memory_space<vmem>>, vector<16x128xf32>
    %15 = arith.addf %13, %14 : vector<16x128xf32>
    %c5 = arith.constant 5 : index
    %c384 = arith.constant 384 : index
    %16 = vector.load %arg6[%c5, %c384] : memref<24x512xf32, #tpu.memory_space<vmem>>, vector<16x128xf32>
    %17 = arith.addf %15, %16 : vector<16x128xf32>
    %c0_10 = arith.constant 0 : index
    %c0_11 = arith.constant 0 : index
    %18 = vector.load %arg4[%c0_10, %c0_11] : memref<16x128xf32, #tpu.memory_space<vmem>>, vector<16x128xf32>
    %19 = arith.mulf %17, %18 : vector<16x128xf32>
    %c0_12 = arith.constant 0 : index
    %c0_13 = arith.constant 0 : index
    %c0_14 = arith.constant 0 : index
    %20 = vector.load %arg5[%c0_12, %c0_13, %c0_14] : memref<1x16x128xf32, #tpu.memory_space<vmem>>, vector<1x16x128xf32>
    %21 = vector.shape_cast %20 : vector<1x16x128xf32> to vector<16x128xf32>
    %22 = vector.shape_cast %19 : vector<16x128xf32> to vector<1x16x128xf32>
    tpu.vector_store %arg5[%c0_12, %c0_13, %c0_14], %22 {strides = array<i32>} : memref<1x16x128xf32, #tpu.memory_space<vmem>>, vector<1x16x128xf32>,
    return
  }
  func.func @transform_0(%arg0: i32, %arg1: i32) -> (i32, i32, i32) {
    %c0_i32 = arith.constant 0 : i32
    %c0_i32_0 = arith.constant 0 : i32
    return %arg0, %arg1, %c0_i32 : i32, i32, i32
  }
  func.func @transform_1(%arg0: i32, %arg1: i32) -> (i32, i32) {
    %c0_i32 = arith.constant 0 : i32
    %c0_i32_0 = arith.constant 0 : i32
    %c0_i32_1 = arith.constant 0 : i32
    return %c0_i32, %c0_i32_0 : i32, i32
  }
  func.func @transform_2(%arg0: i32, %arg1: i32) -> (i32, i32) {
    %c0_i32 = arith.constant 0 : i32
    %c0_i32_0 = arith.constant 0 : i32
    return %arg1, %c0_i32 : i32, i32
  }
  func.func @transform_3(%arg0: i32, %arg1: i32) -> (i32, i32, i32) {
    %c0_i32 = arith.constant 0 : i32
    %c0_i32_0 = arith.constant 0 : i32
    return %arg0, %arg1, %c0_i32 : i32, i32, i32
  }
}

</mosaic_0001>

<llo_original>
// kernel: tpu_custom_call.1
$region0: #{tpu_custom_call.1}
  #allocation0 [shape = 'u32[]', space=smem, size = 0x4, offset = 0x4, fixed_abs, tag = 'smem constant byte address 0x4 - core index']
  #allocation1 [shape = 'u32[144,128]{1,0:T(1,128)}', space=vmem, size = 0x12000, scoped, tag = 'internal scratch']
  #allocation2 [shape = 'f32[24,512]{1,0:T(8,128)}', space=vmem, size = 0xc000, scoped, tag = 'scratch operand']
  %s0 = inlined_call_operand.hbm [shape: bf16[2,16,512], index: 0, kind: input, shape index: {}]
  %s1 = inlined_call_operand.hbm [shape: bf16[512,512], index: 1, kind: input, shape index: {}]
  %s2 = inlined_call_operand.hbm [shape: f32[16,128], index: 2, kind: input, shape index: {}]
  %s3 = inlined_call_operand.hbm [shape: f32[2,16,128], index: 3, kind: output, shape index: {}]
  %s4 = sld [smem:[#allocation0]]
  $region65: #{tpu_custom_call.1} parent=0
    _
  %s6 = ssub.s32 1, %s4
  %s7 = scalar_select 0, %s6, %s4
  $region1: #{tpu_custom_call.1} parent=0
    #allocation3 [shape = 'u8[32768]{0}', space=vmem, size = 0x8000, scoped, tag = 'input window, operand 0']
    #allocation4 [shape = 's32[2]{0}', space=sflag, size = 0x8, scoped, tag = 'scoped memory for tpu_custom_call.1']
    #allocation5 [shape = 's32[2]{0}', space=sflag, size = 0x8, scoped, tag = 'scoped memory for tpu_custom_call.1']
    #allocation6 [shape = 'u8[524288]{0}', space=vmem, size = 0x80000, scoped, tag = 'input window, operand 1, single buffered']
    #allocation7 [shape = 's32[1]{0}', space=sflag, size = 0x4, scoped, tag = 'scoped memory for tpu_custom_call.1']
    #allocation8 [shape = 'u8[8192]{0}', space=vmem, size = 0x2000, scoped, tag = 'input window, operand 2, single buffered']
    #allocation9 [shape = 'u8[16384]{0}', space=vmem, size = 0x4000, scoped, tag = 'output window, operand 0']
    %8 = vsyncpa [#allocation4], 0
    %s9 = scalar_lea.sflag [#allocation4], 1
    %10 = vsyncpa %s9, 0
    %11 = vsyncpa [#allocation7], 0
    %12 = vsyncpa [#allocation5], 0
    %s13 = scalar_lea.sflag [#allocation5], 1
    %14 = vsyncpa %s13, 0
    loop: start=0, step=1, limit=4
    $region2: #{tpu_custom_call.1} parent=1 // loop_pre_header
      _
    $region3: #{tpu_custom_call.1} parent=1 // loop_header
      %s16 = sphi 0, %s20
      %p17 = scmp.ge.s32.totalorder %s16, 4
      %s23 = sphi 0, %s35
      %s24 = sphi 0, %s31
      %s25 = sphi 0, %s23
      %s26 = sphi 0, %s24
      %s27 = sphi 0, %s25
      %s28 = sphi 0, %s26
      %s40 = sphi 0, %s42
      %s43 = sphi 0, %s40
      %s44 = sphi 0, %s43
      %s60 = sphi 0, %s44
      %s64 = sphi 0, %s64
      %s66 = sphi 0, %s64
      %s67 = sphi 0, %s66
      %s81 = sphi 0, %s67
      %s87 = sphi 0, %s89
      %s90 = sphi 0, %s87
      %s91 = sphi 0, %s90
      %s107 = sphi 0, %s91
      %s115 = sphi 0, %s117
      %s118 = sphi 0, %s115
      %s119 = sphi 0, %s118
      %s135 = sphi 0, %s119
    $region4: #{tpu_custom_call.1} parent=1 // loop_header_branch
      %19 = sbr.rel (%p17) target = $region8
    $region5: #{tpu_custom_call.1} parent=1 // loop_body
      %s21 = ssub.s32 %s16, 1
      %s22 = ssub.s32 %s16, 2
      %s29 = sadd.s32 1, %s24
      %p30 = scmp.ge.s32.totalorder %s29, 1
      %s31 = scalar_select %p30, 0, %s29
      %s32 = sadd.s32 1, %s23
      %s33 = scalar_select %p30, %s32, %s23
      %p34 = scmp.ge.s32.totalorder %s33, 2
      %s35 = scalar_select %p34, 0, %s33
      %s36 = ssub.s32 %s23, %s35
      %s37 = ssub.s32 %s24, %s31
      %s38 = sor.u32 %s36, %s37
      %p39 = scmp.eq.s32.totalorder %s38, 0
      %s41 = sadd.s32 %s40, 1
      %s42 = scalar_select %p39, %s40, %s41
      %p45 = pneg %p39
      %p46 = scmp.eq.s32.totalorder %s16, 1
      %p47 = por %p45, %p46
      %p48 = scmp.ne.s32.totalorder %s40, %s43
      %p49 = scmp.eq.s32.totalorder %s16, 0
      %p50 = por %p48, %p49
      %p51 = scmp.ne.s32.totalorder %s40, %s43
      %p52 = scmp.eq.s32.totalorder %s21, 1
      %p53 = por %p51, %p52
      %p54 = scmp.ne.s32.totalorder %s43, %s44
      %p55 = scmp.eq.s32.totalorder %s21, 0
      %p56 = por %p54, %p55
      %p57 = scmp.ne.s32.totalorder %s43, %s44
      %p58 = scmp.eq.s32.totalorder %s22, 1
      %p59 = por %p57, %p58
      %p61 = scmp.ne.s32.totalorder %s44, %s60
      %p62 = scmp.eq.s32.totalorder %s22, 0
      %p63 = por %p61, %p62
      %s65 = sadd.s32 %s64, 1
      %p68 = scmp.eq.s32.totalorder %s16, 1
      %p69 = scmp.ne.s32.totalorder %s64, %s66
      %p70 = scmp.eq.s32.totalorder %s16, 0
      %p71 = por %p69, %p70
      %p72 = scmp.ne.s32.totalorder %s64, %s66
      %p73 = scmp.eq.s32.totalorder %s21, 1
      %p74 = por %p72, %p73
      %p75 = scmp.ne.s32.totalorder %s66, %s67
      %p76 = scmp.eq.s32.totalorder %s21, 0
      %p77 = por %p75, %p76
      %p78 = scmp.ne.s32.totalorder %s66, %s67
      %p79 = scmp.eq.s32.totalorder %s22, 1
      %p80 = por %p78, %p79
      %p82 = scmp.ne.s32.totalorder %s67, %s81
      %p83 = scmp.eq.s32.totalorder %s22, 0
      %p84 = por %p82, %p83
      %s85 = ssub.s32 %s24, %s31
      %p86 = scmp.eq.s32.totalorder %s85, 0
      %s88 = sadd.s32 %s87, 1
      %s89 = scalar_select %p86, %s87, %s88
      %p92 = pneg %p86
      %p93 = scmp.eq.s32.totalorder %s16, 1
      %p94 = por %p92, %p93
      %p95 = scmp.ne.s32.totalorder %s87, %s90
      %p96 = scmp.eq.s32.totalorder %s16, 0
      %p97 = por %p95, %p96
      %p98 = scmp.ne.s32.totalorder %s87, %s90
      %p99 = scmp.eq.s32.totalorder %s21, 1
      %p100 = por %p98, %p99
      %p101 = scmp.ne.s32.totalorder %s90, %s91
      %p102 = scmp.eq.s32.totalorder %s21, 0
      %p103 = por %p101, %p102
      %p104 = scmp.ne.s32.totalorder %s90, %s91
      %p105 = scmp.eq.s32.totalorder %s22, 1
      %p106 = por %p104, %p105
      %p108 = scmp.ne.s32.totalorder %s91, %s107
      %p109 = scmp.eq.s32.totalorder %s22, 0
      %p110 = por %p108, %p109
      %s111 = ssub.s32 %s23, %s35
      %s112 = ssub.s32 %s24, %s31
      %s113 = sor.u32 %s111, %s112
      %p114 = scmp.eq.s32.totalorder %s113, 0
      %s116 = sadd.s32 %s115, 1
      %s117 = scalar_select %p114, %s115, %s116
      %p120 = pneg %p114
      %p121 = scmp.eq.s32.totalorder %s16, 1
      %p122 = por %p120, %p121
      %p123 = scmp.ne.s32.totalorder %s115, %s118
      %p124 = scmp.eq.s32.totalorder %s16, 0
      %p125 = por %p123, %p124
      %p126 = scmp.ne.s32.totalorder %s115, %s118
      %p127 = scmp.eq.s32.totalorder %s21, 1
      %p128 = por %p126, %p127
      %p129 = scmp.ne.s32.totalorder %s118, %s119
      %p130 = scmp.eq.s32.totalorder %s21, 0
      %p131 = por %p129, %p130
      %p132 = scmp.ne.s32.totalorder %s118, %s119
      %p133 = scmp.eq.s32.totalorder %s22, 1
      %p134 = por %p132, %p133
      %p136 = scmp.ne.s32.totalorder %s119, %s135
      %p137 = scmp.eq.s32.totalorder %s22, 0
      %p138 = por %p136, %p137
      %p139 = scmp.le.s32.totalorder 1, %s16
      %p140 = scmp.lt.s32.totalorder %s16, 3
      %p141 = pnand %p139, %p140
      %p142 = pneg %p141
      // Predicated region
      $region9: #{tpu_custom_call.1} parent=5 // pred_check
        _
      $region10: #{tpu_custom_call.1} parent=5 // pred_check_branch
        %144 = sbr.rel (%p141) target = $region12
      $region11: #{tpu_custom_call.1} parent=5 // pred_region
        %s145 = ssub.s32 %s16, 1
        // Predicated region
        $region13: #{tpu_custom_call.1} parent=11 // pred_check
          %p146 = pneg %p77
        $region14: #{tpu_custom_call.1} parent=11 // pred_check_branch
          %148 = sbr.rel (%p146) target = $region16
        $region15: #{tpu_custom_call.1} parent=11 // pred_region
          %s150 = ssub.s32 16384, 16384
          %151 = vsyncadd [#allocation7], %s150
          %s152 = sshll.u32 [#allocation6], 4
          %s153 = int_to_ptr.vmem [resolvable:$true] %s152
          %158 = dma.hbm_to_vmem [thread:$0]  %s1, 16384, %s153, [#allocation7], 256, 256, 16
        $region16: #{tpu_custom_call.1} parent=11 // pred_fallthru
          _
        // Predicated region
        $region17: #{tpu_custom_call.1} parent=11 // pred_check
          %p159 = pneg %p103
        $region18: #{tpu_custom_call.1} parent=11 // pred_check_branch
          %161 = sbr.rel (%p159) target = $region20
        $region19: #{tpu_custom_call.1} parent=11 // pred_region
          %s162 = smul.u32 2, %s26
          %s164 = ssub.s32 256, 256
          %165 = vsyncadd [#allocation7], %s164
          %s166 = smul.addr %s162, 128
          %s167 = scalar_lea.hbm %s2, %s166
          %s168 = sshll.u32 [#allocation8], 4
          %s169 = int_to_ptr.vmem [resolvable:$true] %s168
          %174 = dma.hbm_to_vmem [thread:$0]  %s167, 256, %s169, [#allocation7], 128, 128, 8
        $region20: #{tpu_custom_call.1} parent=11 // pred_fallthru
          _
      $region12: #{tpu_custom_call.1} parent=5 // pred_fallthru
        _
      %p175 = scmp.lt.s32.totalorder %s16, 2
      // Predicated region
      $region21: #{tpu_custom_call.1} parent=5 // pred_check
        %p176 = pneg %p175
      $region22: #{tpu_custom_call.1} parent=5 // pred_check_branch
        %178 = sbr.rel (%p176) target = $region24
      $region23: #{tpu_custom_call.1} parent=5 // pred_region
        // Predicated region
        $region25: #{tpu_custom_call.1} parent=23 // pred_check
          %p179 = pneg %p50
        $region26: #{tpu_custom_call.1} parent=23 // pred_check_branch
          %181 = sbr.rel (%p179) target = $region28
        $region27: #{tpu_custom_call.1} parent=23 // pred_region
          %s182 = sand.u32 %s40, 1
          %s183 = scalar_lea.sflag [#allocation4], %s182
          %s184 = sand.u32 %s40, 1
          %s185 = smul.addr %s184, 32
          %s186 = scalar_lea.vmem [#allocation3], %s185
          %s187 = smul.u32 2, %s24
          %s189 = ssub.s32 512, 512
          %190 = vsyncadd %s183, %s189
          %s191 = smul.addr %s187, 4
          %s192 = smul.addr %s23, 8
          %s193 = sadd.s32 %s191, %s192
          %s194 = smul.addr %s193, 64
          %s195 = scalar_lea.hbm %s0, %s194
          %s196 = sshll.u32 %s186, 4
          %s197 = int_to_ptr.vmem [resolvable:$true] %s196
          %202 = dma.hbm_to_vmem [thread:$0]  %s195, 512, %s197, %s183, 256, 256, 16
        $region28: #{tpu_custom_call.1} parent=23 // pred_fallthru
          _
      $region24: #{tpu_custom_call.1} parent=5 // pred_fallthru
        _
      %p203 = scmp.le.s32.totalorder 1, %s16
      %p204 = scmp.lt.s32.totalorder %s16, 3
      %p205 = pnand %p203, %p204
      %p206 = pneg %p205
      // Predicated region
      $region29: #{tpu_custom_call.1} parent=5 // pred_check
        _
      $region30: #{tpu_custom_call.1} parent=5 // pred_check_branch
        %208 = sbr.rel (%p205) target = $region32
      $region31: #{tpu_custom_call.1} parent=5 // pred_region
        %s209 = ssub.s32 %s16, 1
        %s210 = sand.u32 %s43, 1
        %s211 = scalar_lea.sflag [#allocation4], %s210
        %s212 = sand.u32 %s43, 1
        %s213 = smul.addr %s212, 32
        %s214 = scalar_lea.vmem [#allocation3], %s213
        // Predicated region
        $region33: #{tpu_custom_call.1} parent=31 // pred_check
          %p215 = pneg %p56
        $region34: #{tpu_custom_call.1} parent=31 // pred_check_branch
          %217 = sbr.rel (%p215) target = $region36
        $region35: #{tpu_custom_call.1} parent=31 // pred_region
          %218 = dma.done %s211, 512
        $region36: #{tpu_custom_call.1} parent=31 // pred_fallthru
          _
        // Predicated region
        $region37: #{tpu_custom_call.1} parent=31 // pred_check
          %p219 = pneg %p77
        $region38: #{tpu_custom_call.1} parent=31 // pred_check_branch
          %221 = sbr.rel (%p219) target = $region40
        $region39: #{tpu_custom_call.1} parent=31 // pred_region
          %222 = dma.done [#allocation7], 16384
        $region40: #{tpu_custom_call.1} parent=31 // pred_fallthru
          _
        // Predicated region
        $region41: #{tpu_custom_call.1} parent=31 // pred_check
          %p223 = pneg %p103
        $region42: #{tpu_custom_call.1} parent=31 // pred_check_branch
          %225 = sbr.rel (%p223) target = $region44
        $region43: #{tpu_custom_call.1} parent=31 // pred_region
          %226 = dma.done [#allocation7], 256
        $region44: #{tpu_custom_call.1} parent=31 // pred_fallthru
          _
        %s227 = sand.u32 %s43, 1
        %s228 = scalar_lea.sflag [#allocation4], %s227
        %s229 = sand.u32 %s43, 1
        %s230 = smul.addr %s229, 32
        %s231 = scalar_lea.vmem [#allocation3], %s230
        %p232 = pneg %p56
        %p233 = pneg %p53
        %p234 = pneg %p77
        %p235 = pneg %p74
        %p236 = pneg %p103
        %p237 = pneg %p100
        %p238 = pneg %p131
        %p239 = pneg %p128
        %s240 = sand.u32 %s118, 1
        %s241 = scalar_lea.sflag [#allocation5], %s240
        %s242 = sand.u32 %s118, 1
        %s243 = smul.addr %s242, 16
        %s244 = scalar_lea.vmem [#allocation9], %s243
        %s245 = smul.u32 2, %s26
        %s246 = smul.u32 2, %s26
        %s247 = smul.u32 2, %s26
        %p248 = scmp.eq.s32.totalorder %s26, 0
        // Predicated region
        $region45: #{tpu_custom_call.1} parent=31 // pred_check
          %p249 = pneg %p248
        $region46: #{tpu_custom_call.1} parent=31 // pred_check_branch
          %251 = sbr.rel (%p249) target = $region48
        $region47: #{tpu_custom_call.1} parent=31 // pred_region
          %252 = vst [vmem:[#allocation2] sm:$0xff] 0.0
          %253 = vst [vmem:[#allocation2 + $0x8] sm:$0xff] 0.0
          %254 = vst [vmem:[#allocation2 + $0x10] sm:$0xff] 0.0
          %255 = vst [vmem:[#allocation2 + $0x18] sm:$0xff] 0.0
        $region48: #{tpu_custom_call.1} parent=31 // pred_fallthru
          _
        %p256 = scmp.gt.s32.totalorder %s26, 0
        // Predicated region
        $region49: #{tpu_custom_call.1} parent=31 // pred_check
          %p257 = pneg %p256
        $region50: #{tpu_custom_call.1} parent=31 // pred_check_branch
          %259 = sbr.rel (%p257) target = $region52
        $region51: #{tpu_custom_call.1} parent=31 // pred_region
          %v260 = vld [vmem:[#allocation2 + $0x40] sm:$0xff]
          %v261 = vld [vmem:[#allocation2 + $0x48] sm:$0xff]
          %v262 = vld [vmem:[#allocation2 + $0x50] sm:$0xff]
          %v263 = vld [vmem:[#allocation2 + $0x58] sm:$0xff]
          %264 = vst [vmem:[#allocation2] sm:$0xff] %v260
          %265 = vst [vmem:[#allocation2 + $0x8] sm:$0xff] %v261
          %266 = vst [vmem:[#allocation2 + $0x10] sm:$0xff] %v262
          %267 = vst [vmem:[#allocation2 + $0x18] sm:$0xff] %v263
        $region52: #{tpu_custom_call.1} parent=31 // pred_fallthru
          _
        %v268 = vld [vmem:[%s214] sm:$0xff]
        %v269 = vld [vmem:[%s214 + $0x8] sm:$0xff]
        %v270 = vld [vmem:[%s214 + $0x10] sm:$0xff]
        %v271 = vld [vmem:[%s214 + $0x18] sm:$0xff]
        %v272 = vld [vmem:[#allocation6] sm:$0xff]
        %v273 = vld [vmem:[#allocation6 + $0x8] sm:$0xff]
        %v274 = vld [vmem:[#allocation6 + $0x10] sm:$0xff]
        %v275 = vld [vmem:[#allocation6 + $0x18] sm:$0xff]
        %v276 = vld [vmem:[#allocation6 + $0x20] sm:$0xff]
        %v277 = vld [vmem:[#allocation6 + $0x28] sm:$0xff]
        %v278 = vld [vmem:[#allocation6 + $0x30] sm:$0xff]
        %v279 = vld [vmem:[#allocation6 + $0x38] sm:$0xff]
        %v280 = vld [vmem:[#allocation6 + $0x40] sm:$0xff]
        %v281 = vld [vmem:[#allocation6 + $0x48] sm:$0xff]
        %v282 = vld [vmem:[#allocation6 + $0x50] sm:$0xff]
        %v283 = vld [vmem:[#allocation6 + $0x58] sm:$0xff]
        %v284 = vld [vmem:[#allocation6 + $0x60] sm:$0xff]
        %v285 = vld [vmem:[#allocation6 + $0x68] sm:$0xff]
        %v286 = vld [vmem:[#allocation6 + $0x70] sm:$0xff]
        %v287 = vld [vmem:[#allocation6 + $0x78] sm:$0xff]
        %v288 = vld [vmem:[#allocation6 + $0x80] sm:$0xff]
        %v289 = vld [vmem:[#allocation6 + $0x88] sm:$0xff]
        %v290 = vld [vmem:[#allocation6 + $0x90] sm:$0xff]
        %v291 = vld [vmem:[#allocation6 + $0x98] sm:$0xff]
        %v292 = vld [vmem:[#allocation6 + $0xa0] sm:$0xff]
        %v293 = vld [vmem:[#allocation6 + $0xa8] sm:$0xff]
        %v294 = vld [vmem:[#allocation6 + $0xb0] sm:$0xff]
        %v295 = vld [vmem:[#allocation6 + $0xb8] sm:$0xff]
        %v296 = vld [vmem:[#allocation6 + $0xc0] sm:$0xff]
        %v297 = vld [vmem:[#allocation6 + $0xc8] sm:$0xff]
        %v298 = vld [vmem:[#allocation6 + $0xd0] sm:$0xff]
        %v299 = vld [vmem:[#allocation6 + $0xd8] sm:$0xff]
        %v300 = vld [vmem:[#allocation6 + $0xe0] sm:$0xff]
        %v301 = vld [vmem:[#allocation6 + $0xe8] sm:$0xff]
        %v302 = vld [vmem:[#allocation6 + $0xf0] sm:$0xff]
        %v303 = vld [vmem:[#allocation6 + $0xf8] sm:$0xff]
        %v304 = vld [vmem:[#allocation6 + $0x100] sm:$0xff]
        %v305 = vld [vmem:[#allocation6 + $0x108] sm:$0xff]
        %v306 = vld [vmem:[#allocation6 + $0x110] sm:$0xff]
        %v307 = vld [vmem:[#allocation6 + $0x118] sm:$0xff]
        %v308 = vld [vmem:[#allocation6 + $0x120] sm:$0xff]
        %v309 = vld [vmem:[#allocation6 + $0x128] sm:$0xff]
        %v310 = vld [vmem:[#allocation6 + $0x130] sm:$0xff]
        %v311 = vld [vmem:[#allocation6 + $0x138] sm:$0xff]
        %v312 = vld [vmem:[#allocation6 + $0x140] sm:$0xff]
        %v313 = vld [vmem:[#allocation6 + $0x148] sm:$0xff]
        %v314 = vld [vmem:[#allocation6 + $0x150] sm:$0xff]
        %v315 = vld [vmem:[#allocation6 + $0x158] sm:$0xff]
        %v316 = vld [vmem:[#allocation6 + $0x160] sm:$0xff]
        %v317 = vld [vmem:[#allocation6 + $0x168] sm:$0xff]
        %v318 = vld [vmem:[#allocation6 + $0x170] sm:$0xff]
        %v319 = vld [vmem:[#allocation6 + $0x178] sm:$0xff]
        %v320 = vld [vmem:[#allocation6 + $0x180] sm:$0xff]
        %v321 = vld [vmem:[#allocation6 + $0x188] sm:$0xff]
        %v322 = vld [vmem:[#allocation6 + $0x190] sm:$0xff]
        %v323 = vld [vmem:[#allocation6 + $0x198] sm:$0xff]
        %v324 = vld [vmem:[#allocation6 + $0x1a0] sm:$0xff]
        %v325 = vld [vmem:[#allocation6 + $0x1a8] sm:$0xff]
        %v326 = vld [vmem:[#allocation6 + $0x1b0] sm:$0xff]
        %v327 = vld [vmem:[#allocation6 + $0x1b8] sm:$0xff]
        %v328 = vld [vmem:[#allocation6 + $0x1c0] sm:$0xff]
        %v329 = vld [vmem:[#allocation6 + $0x1c8] sm:$0xff]
        %v330 = vld [vmem:[#allocation6 + $0x1d0] sm:$0xff]
        %v331 = vld [vmem:[#allocation6 + $0x1d8] sm:$0xff]
        %v332 = vld [vmem:[#allocation6 + $0x1e0] sm:$0xff]
        %v333 = vld [vmem:[#allocation6 + $0x1e8] sm:$0xff]
        %v334 = vld [vmem:[#allocation6 + $0x1f0] sm:$0xff]
        %v335 = vld [vmem:[#allocation6 + $0x1f8] sm:$0xff]
        %v336 = vld [vmem:[#allocation6 + $0x200] sm:$0xff]
        %v337 = vld [vmem:[#allocation6 + $0x208] sm:$0xff]
        %v338 = vld [vmem:[#allocation6 + $0x210] sm:$0xff]
        %v339 = vld [vmem:[#allocation6 + $0x218] sm:$0xff]
        %v340 = vld [vmem:[#allocation6 + $0x220] sm:$0xff]
        %v341 = vld [vmem:[#allocation6 + $0x228] sm:$0xff]
        %v342 = vld [vmem:[#allocation6 + $0x230] sm:$0xff]
        %v343 = vld [vmem:[#allocation6 + $0x238] sm:$0xff]
        %v344 = vld [vmem:[#allocation6 + $0x240] sm:$0xff]
        %v345 = vld [vmem:[#allocation6 + $0x248] sm:$0xff]
        %v346 = vld [vmem:[#allocation6 + $0x250] sm:$0xff]
        %v347 = vld [vmem:[#allocation6 + $0x258] sm:$0xff]
        %v348 = vld [vmem:[#allocation6 + $0x260] sm:$0xff]
        %v349 = vld [vmem:[#allocation6 + $0x268] sm:$0xff]
        %v350 = vld [vmem:[#allocation6 + $0x270] sm:$0xff]
        %v351 = vld [vmem:[#allocation6 + $0x278] sm:$0xff]
        %v352 = vld [vmem:[#allocation6 + $0x280] sm:$0xff]
        %v353 = vld [vmem:[#allocation6 + $0x288] sm:$0xff]
        %v354 = vld [vmem:[#allocation6 + $0x290] sm:$0xff]
        %v355 = vld [vmem:[#allocation6 + $0x298] sm:$0xff]
        %v356 = vld [vmem:[#allocation6 + $0x2a0] sm:$0xff]
        %v357 = vld [vmem:[#allocation6 + $0x2a8] sm:$0xff]
        %v358 = vld [vmem:[#allocation6 + $0x2b0] sm:$0xff]
        %v359 = vld [vmem:[#allocation6 + $0x2b8] sm:$0xff]
        %v360 = vld [vmem:[#allocation6 + $0x2c0] sm:$0xff]
        %v361 = vld [vmem:[#allocation6 + $0x2c8] sm:$0xff]
        %v362 = vld [vmem:[#allocation6 + $0x2d0] sm:$0xff]
        %v363 = vld [vmem:[#allocation6 + $0x2d8] sm:$0xff]
        %v364 = vld [vmem:[#allocation6 + $0x2e0] sm:$0xff]
        %v365 = vld [vmem:[#allocation6 + $0x2e8] sm:$0xff]
        %v366 = vld [vmem:[#allocation6 + $0x2f0] sm:$0xff]
        %v367 = vld [vmem:[#allocation6 + $0x2f8] sm:$0xff]
        %v368 = vld [vmem:[#allocation6 + $0x300] sm:$0xff]
        %v369 = vld [vmem:[#allocation6 + $0x308] sm:$0xff]
        %v370 = vld [vmem:[#allocation6 + $0x310] sm:$0xff]
        %v371 = vld [vmem:[#allocation6 + $0x318] sm:$0xff]
        %v372 = vld [vmem:[#allocation6 + $0x320] sm:$0xff]
        %v373 = vld [vmem:[#allocation6 + $0x328] sm:$0xff]
        %v374 = vld [vmem:[#allocation6 + $0x330] sm:$0xff]
        %v375 = vld [vmem:[#allocation6 + $0x338] sm:$0xff]
        %v376 = vld [vmem:[#allocation6 + $0x340] sm:$0xff]
        %v377 = vld [vmem:[#allocation6 + $0x348] sm:$0xff]
        %v378 = vld [vmem:[#allocation6 + $0x350] sm:$0xff]
        %v379 = vld [vmem:[#allocation6 + $0x358] sm:$0xff]
        %v380 = vld [vmem:[#allocation6 + $0x360] sm:$0xff]
        %v381 = vld [vmem:[#allocation6 + $0x368] sm:$0xff]
        %v382 = vld [vmem:[#allocation6 + $0x370] sm:$0xff]
        %v383 = vld [vmem:[#allocation6 + $0x378] sm:$0xff]
        %v384 = vld [vmem:[#allocation6 + $0x380] sm:$0xff]
        %v385 = vld [vmem:[#allocation6 + $0x388] sm:$0xff]
        %v386 = vld [vmem:[#allocation6 + $0x390] sm:$0xff]
        %v387 = vld [vmem:[#allocation6 + $0x398] sm:$0xff]
        %v388 = vld [vmem:[#allocation6 + $0x3a0] sm:$0xff]
        %v389 = vld [vmem:[#allocation6 + $0x3a8] sm:$0xff]
        %v390 = vld [vmem:[#allocation6 + $0x3b0] sm:$0xff]
        %v391 = vld [vmem:[#allocation6 + $0x3b8] sm:$0xff]
        %v392 = vld [vmem:[#allocation6 + $0x3c0] sm:$0xff]
        %v393 = vld [vmem:[#allocation6 + $0x3c8] sm:$0xff]
        %v394 = vld [vmem:[#allocation6 + $0x3d0] sm:$0xff]
        %v395 = vld [vmem:[#allocation6 + $0x3d8] sm:$0xff]
        %v396 = vld [vmem:[#allocation6 + $0x3e0] sm:$0xff]
        %v397 = vld [vmem:[#allocation6 + $0x3e8] sm:$0xff]
        %v398 = vld [vmem:[#allocation6 + $0x3f0] sm:$0xff]
        %v399 = vld [vmem:[#allocation6 + $0x3f8] sm:$0xff]
        %v404 = vunpack.c.l.b16 %v268
        %v405 = vunpack.c.h.b16 %v268
        %v406 = vunpack.c.l.b16 %v269
        %v407 = vunpack.c.h.b16 %v269
        %v408 = vunpack.c.l.b16 %v270
        %v409 = vunpack.c.h.b16 %v270
        %v410 = vunpack.c.l.b16 %v271
        %v411 = vunpack.c.h.b16 %v271
        %v412 = vpack.c.b16 %v408, %v404
        %v413 = vpack.c.b16 %v409, %v405
        %v414 = vpack.c.b16 %v410, %v406
        %v415 = vpack.c.b16 %v411, %v407
        %v548 = vunpack.c.l.b16 %v272
        %v549 = vunpack.c.h.b16 %v272
        %v550 = vunpack.c.l.b16 %v273
        %v551 = vunpack.c.h.b16 %v273
        %v552 = vunpack.c.l.b16 %v274
        %v553 = vunpack.c.h.b16 %v274
        %v554 = vunpack.c.l.b16 %v275
        %v555 = vunpack.c.h.b16 %v275
        %v556 = vunpack.c.l.b16 %v276
        %v557 = vunpack.c.h.b16 %v276
        %v558 = vunpack.c.l.b16 %v277
        %v559 = vunpack.c.h.b16 %v277
        %v560 = vunpack.c.l.b16 %v278
        %v561 = vunpack.c.h.b16 %v278
        %v562 = vunpack.c.l.b16 %v279
        %v563 = vunpack.c.h.b16 %v279
        %v564 = vunpack.c.l.b16 %v280
        %v565 = vunpack.c.h.b16 %v280
        %v566 = vunpack.c.l.b16 %v281
        %v567 = vunpack.c.h.b16 %v281
        %v568 = vunpack.c.l.b16 %v282
        %v569 = vunpack.c.h.b16 %v282
        %v570 = vunpack.c.l.b16 %v283
        %v571 = vunpack.c.h.b16 %v283
        %v572 = vunpack.c.l.b16 %v284
        %v573 = vunpack.c.h.b16 %v284
        %v574 = vunpack.c.l.b16 %v285
        %v575 = vunpack.c.h.b16 %v285
        %v576 = vunpack.c.l.b16 %v286
        %v577 = vunpack.c.h.b16 %v286
        %v578 = vunpack.c.l.b16 %v287
        %v579 = vunpack.c.h.b16 %v287
        %v580 = vunpack.c.l.b16 %v288
        %v581 = vunpack.c.h.b16 %v288
        %v582 = vunpack.c.l.b16 %v289
        %v583 = vunpack.c.h.b16 %v289
        %v584 = vunpack.c.l.b16 %v290
        %v585 = vunpack.c.h.b16 %v290
        %v586 = vunpack.c.l.b16 %v291
        %v587 = vunpack.c.h.b16 %v291
        %v588 = vunpack.c.l.b16 %v292
        %v589 = vunpack.c.h.b16 %v292
        %v590 = vunpack.c.l.b16 %v293
        %v591 = vunpack.c.h.b16 %v293
        %v592 = vunpack.c.l.b16 %v294
        %v593 = vunpack.c.h.b16 %v294
        %v594 = vunpack.c.l.b16 %v295
        %v595 = vunpack.c.h.b16 %v295
        %v596 = vunpack.c.l.b16 %v296
        %v597 = vunpack.c.h.b16 %v296
        %v598 = vunpack.c.l.b16 %v297
        %v599 = vunpack.c.h.b16 %v297
        %v600 = vunpack.c.l.b16 %v298
        %v601 = vunpack.c.h.b16 %v298
        %v602 = vunpack.c.l.b16 %v299
        %v603 = vunpack.c.h.b16 %v299
        %v604 = vunpack.c.l.b16 %v300
        %v605 = vunpack.c.h.b16 %v300
        %v606 = vunpack.c.l.b16 %v301
        %v607 = vunpack.c.h.b16 %v301
        %v608 = vunpack.c.l.b16 %v302
        %v609 = vunpack.c.h.b16 %v302
        %v610 = vunpack.c.l.b16 %v303
        %v611 = vunpack.c.h.b16 %v303
        %v612 = vunpack.c.l.b16 %v304
        %v613 = vunpack.c.h.b16 %v304
        %v614 = vunpack.c.l.b16 %v305
        %v615 = vunpack.c.h.b16 %v305
        %v616 = vunpack.c.l.b16 %v306
        %v617 = vunpack.c.h.b16 %v306
        %v618 = vunpack.c.l.b16 %v307
        %v619 = vunpack.c.h.b16 %v307
        %v620 = vunpack.c.l.b16 %v308
        %v621 = vunpack.c.h.b16 %v308
        %v622 = vunpack.c.l.b16 %v309
        %v623 = vunpack.c.h.b16 %v309
        %v624 = vunpack.c.l.b16 %v310
        %v625 = vunpack.c.h.b16 %v310
        %v626 = vunpack.c.l.b16 %v311
        %v627 = vunpack.c.h.b16 %v311
        %v628 = vunpack.c.l.b16 %v312
        %v629 = vunpack.c.h.b16 %v312
        %v630 = vunpack.c.l.b16 %v313
        %v631 = vunpack.c.h.b16 %v313
        %v632 = vunpack.c.l.b16 %v314
        %v633 = vunpack.c.h.b16 %v314
        %v634 = vunpack.c.l.b16 %v315
        %v635 = vunpack.c.h.b16 %v315
        %v636 = vunpack.c.l.b16 %v316
        %v637 = vunpack.c.h.b16 %v316
        %v638 = vunpack.c.l.b16 %v317
        %v639 = vunpack.c.h.b16 %v317
        %v640 = vunpack.c.l.b16 %v318
        %v641 = vunpack.c.h.b16 %v318
        %v642 = vunpack.c.l.b16 %v319
        %v643 = vunpack.c.h.b16 %v319
        %v644 = vunpack.c.l.b16 %v320
        %v645 = vunpack.c.h.b16 %v320
        %v646 = vunpack.c.l.b16 %v321
        %v647 = vunpack.c.h.b16 %v321
        %v648 = vunpack.c.l.b16 %v322
        %v649 = vunpack.c.h.b16 %v322
        %v650 = vunpack.c.l.b16 %v323
        %v651 = vunpack.c.h.b16 %v323
        %v652 = vunpack.c.l.b16 %v324
        %v653 = vunpack.c.h.b16 %v324
        %v654 = vunpack.c.l.b16 %v325
        %v655 = vunpack.c.h.b16 %v325
        %v656 = vunpack.c.l.b16 %v326
        %v657 = vunpack.c.h.b16 %v326
        %v658 = vunpack.c.l.b16 %v327
        %v659 = vunpack.c.h.b16 %v327
        %v660 = vunpack.c.l.b16 %v328
        %v661 = vunpack.c.h.b16 %v328
        %v662 = vunpack.c.l.b16 %v329
        %v663 = vunpack.c.h.b16 %v329
        %v664 = vunpack.c.l.b16 %v330
        %v665 = vunpack.c.h.b16 %v330
        %v666 = vunpack.c.l.b16 %v331
        %v667 = vunpack.c.h.b16 %v331
        %v668 = vunpack.c.l.b16 %v332
        %v669 = vunpack.c.h.b16 %v332
        %v670 = vunpack.c.l.b16 %v333
        %v671 = vunpack.c.h.b16 %v333
        %v672 = vunpack.c.l.b16 %v334
        %v673 = vunpack.c.h.b16 %v334
        %v674 = vunpack.c.l.b16 %v335
        %v675 = vunpack.c.h.b16 %v335
        %v676 = vunpack.c.l.b16 %v336
        %v677 = vunpack.c.h.b16 %v336
        %v678 = vunpack.c.l.b16 %v337
        %v679 = vunpack.c.h.b16 %v337
        %v680 = vunpack.c.l.b16 %v338
        %v681 = vunpack.c.h.b16 %v338
        %v682 = vunpack.c.l.b16 %v339
        %v683 = vunpack.c.h.b16 %v339
        %v684 = vunpack.c.l.b16 %v340
        %v685 = vunpack.c.h.b16 %v340
        %v686 = vunpack.c.l.b16 %v341
        %v687 = vunpack.c.h.b16 %v341
        %v688 = vunpack.c.l.b16 %v342
        %v689 = vunpack.c.h.b16 %v342
        %v690 = vunpack.c.l.b16 %v343
        %v691 = vunpack.c.h.b16 %v343
        %v692 = vunpack.c.l.b16 %v344
        %v693 = vunpack.c.h.b16 %v344
        %v694 = vunpack.c.l.b16 %v345
        %v695 = vunpack.c.h.b16 %v345
        %v696 = vunpack.c.l.b16 %v346
        %v697 = vunpack.c.h.b16 %v346
        %v698 = vunpack.c.l.b16 %v347
        %v699 = vunpack.c.h.b16 %v347
        %v700 = vunpack.c.l.b16 %v348
        %v701 = vunpack.c.h.b16 %v348
        %v702 = vunpack.c.l.b16 %v349
        %v703 = vunpack.c.h.b16 %v349
        %v704 = vunpack.c.l.b16 %v350
        %v705 = vunpack.c.h.b16 %v350
        %v706 = vunpack.c.l.b16 %v351
        %v707 = vunpack.c.h.b16 %v351
        %v708 = vunpack.c.l.b16 %v352
        %v709 = vunpack.c.h.b16 %v352
        %v710 = vunpack.c.l.b16 %v353
        %v711 = vunpack.c.h.b16 %v353
        %v712 = vunpack.c.l.b16 %v354
        %v713 = vunpack.c.h.b16 %v354
        %v714 = vunpack.c.l.b16 %v355
        %v715 = vunpack.c.h.b16 %v355
        %v716 = vunpack.c.l.b16 %v356
        %v717 = vunpack.c.h.b16 %v356
        %v718 = vunpack.c.l.b16 %v357
        %v719 = vunpack.c.h.b16 %v357
        %v720 = vunpack.c.l.b16 %v358
        %v721 = vunpack.c.h.b16 %v358
        %v722 = vunpack.c.l.b16 %v359
        %v723 = vunpack.c.h.b16 %v359
        %v724 = vunpack.c.l.b16 %v360
        %v725 = vunpack.c.h.b16 %v360
        %v726 = vunpack.c.l.b16 %v361
        %v727 = vunpack.c.h.b16 %v361
        %v728 = vunpack.c.l.b16 %v362
        %v729 = vunpack.c.h.b16 %v362
        %v730 = vunpack.c.l.b16 %v363
        %v731 = vunpack.c.h.b16 %v363
        %v732 = vunpack.c.l.b16 %v364
        %v733 = vunpack.c.h.b16 %v364
        %v734 = vunpack.c.l.b16 %v365
        %v735 = vunpack.c.h.b16 %v365
        %v736 = vunpack.c.l.b16 %v366
        %v737 = vunpack.c.h.b16 %v366
        %v738 = vunpack.c.l.b16 %v367
        %v739 = vunpack.c.h.b16 %v367
        %v740 = vunpack.c.l.b16 %v368
        %v741 = vunpack.c.h.b16 %v368
        %v742 = vunpack.c.l.b16 %v369
        %v743 = vunpack.c.h.b16 %v369
        %v744 = vunpack.c.l.b16 %v370
        %v745 = vunpack.c.h.b16 %v370
        %v746 = vunpack.c.l.b16 %v371
        %v747 = vunpack.c.h.b16 %v371
        %v748 = vunpack.c.l.b16 %v372
        %v749 = vunpack.c.h.b16 %v372
        %v750 = vunpack.c.l.b16 %v373
        %v751 = vunpack.c.h.b16 %v373
        %v752 = vunpack.c.l.b16 %v374
        %v753 = vunpack.c.h.b16 %v374
        %v754 = vunpack.c.l.b16 %v375
        %v755 = vunpack.c.h.b16 %v375
        %v756 = vunpack.c.l.b16 %v376
        %v757 = vunpack.c.h.b16 %v376
        %v758 = vunpack.c.l.b16 %v377
        %v759 = vunpack.c.h.b16 %v377
        %v760 = vunpack.c.l.b16 %v378
        %v761 = vunpack.c.h.b16 %v378
        %v762 = vunpack.c.l.b16 %v379
        %v763 = vunpack.c.h.b16 %v379
        %v764 = vunpack.c.l.b16 %v380
        %v765 = vunpack.c.h.b16 %v380
        %v766 = vunpack.c.l.b16 %v381
        %v767 = vunpack.c.h.b16 %v381
        %v768 = vunpack.c.l.b16 %v382
        %v769 = vunpack.c.h.b16 %v382
        %v770 = vunpack.c.l.b16 %v383
        %v771 = vunpack.c.h.b16 %v383
        %v772 = vunpack.c.l.b16 %v384
        %v773 = vunpack.c.h.b16 %v384
        %v774 = vunpack.c.l.b16 %v385
        %v775 = vunpack.c.h.b16 %v385
        %v776 = vunpack.c.l.b16 %v386
        %v777 = vunpack.c.h.b16 %v386
        %v778 = vunpack.c.l.b16 %v387
        %v779 = vunpack.c.h.b16 %v387
        %v780 = vunpack.c.l.b16 %v388
        %v781 = vunpack.c.h.b16 %v388
        %v782 = vunpack.c.l.b16 %v389
        %v783 = vunpack.c.h.b16 %v389
        %v784 = vunpack.c.l.b16 %v390
        %v785 = vunpack.c.h.b16 %v390
        %v786 = vunpack.c.l.b16 %v391
        %v787 = vunpack.c.h.b16 %v391
        %v788 = vunpack.c.l.b16 %v392
        %v789 = vunpack.c.h.b16 %v392
        %v790 = vunpack.c.l.b16 %v393
        %v791 = vunpack.c.h.b16 %v393
        %v792 = vunpack.c.l.b16 %v394
        %v793 = vunpack.c.h.b16 %v394
        %v794 = vunpack.c.l.b16 %v395
        %v795 = vunpack.c.h.b16 %v395
        %v796 = vunpack.c.l.b16 %v396
        %v797 = vunpack.c.h.b16 %v396
        %v798 = vunpack.c.l.b16 %v397
        %v799 = vunpack.c.h.b16 %v397
        %v800 = vunpack.c.l.b16 %v398
        %v801 = vunpack.c.h.b16 %v398
        %v802 = vunpack.c.l.b16 %v399
        %v803 = vunpack.c.h.b16 %v399
        %v804 = vpack.c.b16 %v552, %v548
        %v805 = vpack.c.b16 %v553, %v549
        %v806 = vpack.c.b16 %v554, %v550
        %v807 = vpack.c.b16 %v555, %v551
        %v808 = vpack.c.b16 %v560, %v556
        %v809 = vpack.c.b16 %v561, %v557
        %v810 = vpack.c.b16 %v562, %v558
        %v811 = vpack.c.b16 %v563, %v559
        %v812 = vpack.c.b16 %v568, %v564
        %v813 = vpack.c.b16 %v569, %v565
        %v814 = vpack.c.b16 %v570, %v566
        %v815 = vpack.c.b16 %v571, %v567
        %v816 = vpack.c.b16 %v576, %v572
        %v817 = vpack.c.b16 %v577, %v573
        %v818 = vpack.c.b16 %v578, %v574
        %v819 = vpack.c.b16 %v579, %v575
        %v820 = vpack.c.b16 %v584, %v580
        %v821 = vpack.c.b16 %v585, %v581
        %v822 = vpack.c.b16 %v586, %v582
        %v823 = vpack.c.b16 %v587, %v583
        %v824 = vpack.c.b16 %v592, %v588
        %v825 = vpack.c.b16 %v593, %v589
        %v826 = vpack.c.b16 %v594, %v590
        %v827 = vpack.c.b16 %v595, %v591
        %v828 = vpack.c.b16 %v600, %v596
        %v829 = vpack.c.b16 %v601, %v597
        %v830 = vpack.c.b16 %v602, %v598
        %v831 = vpack.c.b16 %v603, %v599
        %v832 = vpack.c.b16 %v608, %v604
        %v833 = vpack.c.b16 %v609, %v605
        %v834 = vpack.c.b16 %v610, %v606
        %v835 = vpack.c.b16 %v611, %v607
        %v836 = vpack.c.b16 %v616, %v612
        %v837 = vpack.c.b16 %v617, %v613
        %v838 = vpack.c.b16 %v618, %v614
        %v839 = vpack.c.b16 %v619, %v615
        %v840 = vpack.c.b16 %v624, %v620
        %v841 = vpack.c.b16 %v625, %v621
        %v842 = vpack.c.b16 %v626, %v622
        %v843 = vpack.c.b16 %v627, %v623
        %v844 = vpack.c.b16 %v632, %v628
        %v845 = vpack.c.b16 %v633, %v629
        %v846 = vpack.c.b16 %v634, %v630
        %v847 = vpack.c.b16 %v635, %v631
        %v848 = vpack.c.b16 %v640, %v636
        %v849 = vpack.c.b16 %v641, %v637
        %v850 = vpack.c.b16 %v642, %v638
        %v851 = vpack.c.b16 %v643, %v639
        %v852 = vpack.c.b16 %v648, %v644
        %v853 = vpack.c.b16 %v649, %v645
        %v854 = vpack.c.b16 %v650, %v646
        %v855 = vpack.c.b16 %v651, %v647
        %v856 = vpack.c.b16 %v656, %v652
        %v857 = vpack.c.b16 %v657, %v653
        %v858 = vpack.c.b16 %v658, %v654
        %v859 = vpack.c.b16 %v659, %v655
        %v860 = vpack.c.b16 %v664, %v660
        %v861 = vpack.c.b16 %v665, %v661
        %v862 = vpack.c.b16 %v666, %v662
        %v863 = vpack.c.b16 %v667, %v663
        %v864 = vpack.c.b16 %v672, %v668
        %v865 = vpack.c.b16 %v673, %v669
        %v866 = vpack.c.b16 %v674, %v670
        %v867 = vpack.c.b16 %v675, %v671
        %v868 = vpack.c.b16 %v680, %v676
        %v869 = vpack.c.b16 %v681, %v677
        %v870 = vpack.c.b16 %v682, %v678
        %v871 = vpack.c.b16 %v683, %v679
        %v872 = vpack.c.b16 %v688, %v684
        %v873 = vpack.c.b16 %v689, %v685
        %v874 = vpack.c.b16 %v690, %v686
        %v875 = vpack.c.b16 %v691, %v687
        %v876 = vpack.c.b16 %v696, %v692
        %v877 = vpack.c.b16 %v697, %v693
        %v878 = vpack.c.b16 %v698, %v694
        %v879 = vpack.c.b16 %v699, %v695
        %v880 = vpack.c.b16 %v704, %v700
        %v881 = vpack.c.b16 %v705, %v701
        %v882 = vpack.c.b16 %v706, %v702
        %v883 = vpack.c.b16 %v707, %v703
        %v884 = vpack.c.b16 %v712, %v708
        %v885 = vpack.c.b16 %v713, %v709
        %v886 = vpack.c.b16 %v714, %v710
        %v887 = vpack.c.b16 %v715, %v711
        %v888 = vpack.c.b16 %v720, %v716
        %v889 = vpack.c.b16 %v721, %v717
        %v890 = vpack.c.b16 %v722, %v718
        %v891 = vpack.c.b16 %v723, %v719
        %v892 = vpack.c.b16 %v728, %v724
        %v893 = vpack.c.b16 %v729, %v725
        %v894 = vpack.c.b16 %v730, %v726
        %v895 = vpack.c.b16 %v731, %v727
        %v896 = vpack.c.b16 %v736, %v732
        %v897 = vpack.c.b16 %v737, %v733
        %v898 = vpack.c.b16 %v738, %v734
        %v899 = vpack.c.b16 %v739, %v735
        %v900 = vpack.c.b16 %v744, %v740
        %v901 = vpack.c.b16 %v745, %v741
        %v902 = vpack.c.b16 %v746, %v742
        %v903 = vpack.c.b16 %v747, %v743
        %v904 = vpack.c.b16 %v752, %v748
        %v905 = vpack.c.b16 %v753, %v749
        %v906 = vpack.c.b16 %v754, %v750
        %v907 = vpack.c.b16 %v755, %v751
        %v908 = vpack.c.b16 %v760, %v756
        %v909 = vpack.c.b16 %v761, %v757
        %v910 = vpack.c.b16 %v762, %v758
        %v911 = vpack.c.b16 %v763, %v759
        %v912 = vpack.c.b16 %v768, %v764
        %v913 = vpack.c.b16 %v769, %v765
        %v914 = vpack.c.b16 %v770, %v766
        %v915 = vpack.c.b16 %v771, %v767
        %v916 = vpack.c.b16 %v776, %v772
        %v917 = vpack.c.b16 %v777, %v773
        %v918 = vpack.c.b16 %v778, %v774
        %v919 = vpack.c.b16 %v779, %v775
        %v920 = vpack.c.b16 %v784, %v780
        %v921 = vpack.c.b16 %v785, %v781
        %v922 = vpack.c.b16 %v786, %v782
        %v923 = vpack.c.b16 %v787, %v783
        %v924 = vpack.c.b16 %v792, %v788
        %v925 = vpack.c.b16 %v793, %v789
        %v926 = vpack.c.b16 %v794, %v790
        %v927 = vpack.c.b16 %v795, %v791
        %v928 = vpack.c.b16 %v800, %v796
        %v929 = vpack.c.b16 %v801, %v797
        %v930 = vpack.c.b16 %v802, %v798
        %v931 = vpack.c.b16 %v803, %v799
        %1060 = vmatprep.subr.bf16.mxu0 %v805
        %1061 = vmatpush1.bf16.msra.mxu0 %v804
        %1062 = vmatprep.subr.bf16.mxu0 %v809
        %1063 = vmatpush1.bf16.msra.mxu0 %v808
        %1064 = vmatprep.subr.bf16.mxu0 %v813
        %1065 = vmatpush1.bf16.msra.mxu0 %v812
        %1066 = vmatprep.subr.bf16.mxu0 %v817
        %1067 = vmatpush1.bf16.msra.mxu0 %v816
        %1068 = vmatprep.subr.bf16.mxu0 %v821
        %1069 = vmatpush1.bf16.msra.mxu0 %v820
        %1070 = vmatprep.subr.bf16.mxu0 %v825
        %1071 = vmatpush1.bf16.msra.mxu0 %v824
        %1072 = vmatprep.subr.bf16.mxu0 %v829
        %1073 = vmatpush1.bf16.msra.mxu0 %v828
        %1074 = vmatprep.subr.bf16.mxu0 %v833
        %1075 = vmatpush1.bf16.msra.mxu0 %v832
        %1076 = vmatprep.subr.bf16.mxu0 %v837
        %1077 = vmatpush1.bf16.msra.mxu0 %v836
        %1078 = vmatprep.subr.bf16.mxu0 %v841
        %1079 = vmatpush1.bf16.msra.mxu0 %v840
        %1080 = vmatprep.subr.bf16.mxu0 %v845
        %1081 = vmatpush1.bf16.msra.mxu0 %v844
        %1082 = vmatprep.subr.bf16.mxu0 %v849
        %1083 = vmatpush1.bf16.msra.mxu0 %v848
        %1084 = vmatprep.subr.bf16.mxu0 %v853
        %1085 = vmatpush1.bf16.msra.mxu0 %v852
        %1086 = vmatprep.subr.bf16.mxu0 %v857
        %1087 = vmatpush1.bf16.msra.mxu0 %v856
        %1088 = vmatprep.subr.bf16.mxu0 %v861
        %1089 = vmatpush1.bf16.msra.mxu0 %v860
        %1090 = vmatprep.subr.bf16.mxu0 %v865
        %1091 = vmatpush1.bf16.msra.mxu0 %v864
        %1092 = vmatprep.mubr.bf16.mxu0 %v413
        %1093 = vmatmul.mubr.bf16.gmra.mrb[0].mxu0 %v412
        %v1094 = vpop.f32.mrb[0].mxu0
        %v1095 = vadd.f32 0.0, %v1094
        %v1096 = vpop.f32.mrb[0].mxu0
        %v1097 = vadd.f32 0.0, %v1096
        %v1098 = vpop.f32.mrb[0].mxu0
        %v1099 = vadd.f32 0.0, %v1098
        %v1100 = vpop.f32.mrb[0].mxu0
        %v1101 = vadd.f32 0.0, %v1100
        %1102 = vdwg.mxu0
        %1103 = vmatprep.subr.bf16.mxu0 %v869
        %1104 = vmatpush1.bf16.msra.mxu0 %v868
        %1105 = vmatprep.subr.bf16.mxu0 %v873
        %1106 = vmatpush1.bf16.msra.mxu0 %v872
        %1107 = vmatprep.subr.bf16.mxu0 %v877
        %1108 = vmatpush1.bf16.msra.mxu0 %v876
        %1109 = vmatprep.subr.bf16.mxu0 %v881
        %1110 = vmatpush1.bf16.msra.mxu0 %v880
        %1111 = vmatprep.subr.bf16.mxu0 %v885
        %1112 = vmatpush1.bf16.msra.mxu0 %v884
        %1113 = vmatprep.subr.bf16.mxu0 %v889
        %1114 = vmatpush1.bf16.msra.mxu0 %v888
        %1115 = vmatprep.subr.bf16.mxu0 %v893
        %1116 = vmatpush1.bf16.msra.mxu0 %v892
        %1117 = vmatprep.subr.bf16.mxu0 %v897
        %1118 = vmatpush1.bf16.msra.mxu0 %v896
        %1119 = vmatprep.subr.bf16.mxu0 %v901
        %1120 = vmatpush1.bf16.msra.mxu0 %v900
        %1121 = vmatprep.subr.bf16.mxu0 %v905
        %1122 = vmatpush1.bf16.msra.mxu0 %v904
        %1123 = vmatprep.subr.bf16.mxu0 %v909
        %1124 = vmatpush1.bf16.msra.mxu0 %v908
        %1125 = vmatprep.subr.bf16.mxu0 %v913
        %1126 = vmatpush1.bf16.msra.mxu0 %v912
        %1127 = vmatprep.subr.bf16.mxu0 %v917
        %1128 = vmatpush1.bf16.msra.mxu0 %v916
        %1129 = vmatprep.subr.bf16.mxu0 %v921
        %1130 = vmatpush1.bf16.msra.mxu0 %v920
        %1131 = vmatprep.subr.bf16.mxu0 %v925
        %1132 = vmatpush1.bf16.msra.mxu0 %v924
        %1133 = vmatprep.subr.bf16.mxu0 %v929
        %1134 = vmatpush1.bf16.msra.mxu0 %v928
        %1135 = vmatprep.mubr.bf16.mxu0 %v415
        %1136 = vmatmul.mubr.bf16.gmra.mrb[0].mxu0 %v414
        %v1137 = vpop.f32.mrb[0].mxu0
        %v1138 = vadd.f32 %v1095, %v1137
        %v1139 = vpop.f32.mrb[0].mxu0
        %v1140 = vadd.f32 %v1097, %v1139
        %v1141 = vpop.f32.mrb[0].mxu0
        %v1142 = vadd.f32 %v1099, %v1141
        %v1143 = vpop.f32.mrb[0].mxu0
        %v1144 = vadd.f32 %v1101, %v1143
        %1145 = vdwg.mxu0
        %1146 = vmatprep.subr.bf16.mxu0 %v807
        %1147 = vmatpush1.bf16.msra.mxu0 %v806
        %1148 = vmatprep.subr.bf16.mxu0 %v811
        %1149 = vmatpush1.bf16.msra.mxu0 %v810
        %1150 = vmatprep.subr.bf16.mxu0 %v815
        %1151 = vmatpush1.bf16.msra.mxu0 %v814
        %1152 = vmatprep.subr.bf16.mxu0 %v819
        %1153 = vmatpush1.bf16.msra.mxu0 %v818
        %1154 = vmatprep.subr.bf16.mxu0 %v823
        %1155 = vmatpush1.bf16.msra.mxu0 %v822
        %1156 = vmatprep.subr.bf16.mxu0 %v827
        %1157 = vmatpush1.bf16.msra.mxu0 %v826
        %1158 = vmatprep.subr.bf16.mxu0 %v831
        %1159 = vmatpush1.bf16.msra.mxu0 %v830
        %1160 = vmatprep.subr.bf16.mxu0 %v835
        %1161 = vmatpush1.bf16.msra.mxu0 %v834
        %1162 = vmatprep.subr.bf16.mxu0 %v839
        %1163 = vmatpush1.bf16.msra.mxu0 %v838
        %1164 = vmatprep.subr.bf16.mxu0 %v843
        %1165 = vmatpush1.bf16.msra.mxu0 %v842
        %1166 = vmatprep.subr.bf16.mxu0 %v847
        %1167 = vmatpush1.bf16.msra.mxu0 %v846
        %1168 = vmatprep.subr.bf16.mxu0 %v851
        %1169 = vmatpush1.bf16.msra.mxu0 %v850
        %1170 = vmatprep.subr.bf16.mxu0 %v855
        %1171 = vmatpush1.bf16.msra.mxu0 %v854
        %1172 = vmatprep.subr.bf16.mxu0 %v859
        %1173 = vmatpush1.bf16.msra.mxu0 %v858
        %1174 = vmatprep.subr.bf16.mxu0 %v863
        %1175 = vmatpush1.bf16.msra.mxu0 %v862
        %1176 = vmatprep.subr.bf16.mxu0 %v867
        %1177 = vmatpush1.bf16.msra.mxu0 %v866
        %1178 = vmatprep.mubr.bf16.mxu0 %v413
        %1179 = vmatmul.mubr.bf16.gmra.mrb[0].mxu0 %v412
        %v1180 = vpop.f32.mrb[0].mxu0
        %v1181 = vadd.f32 0.0, %v1180
        %v1182 = vpop.f32.mrb[0].mxu0
        %v1183 = vadd.f32 0.0, %v1182
        %v1184 = vpop.f32.mrb[0].mxu0
        %v1185 = vadd.f32 0.0, %v1184
        %v1186 = vpop.f32.mrb[0].mxu0
        %v1187 = vadd.f32 0.0, %v1186
        %1188 = vdwg.mxu0
        %1189 = vmatprep.subr.bf16.mxu0 %v871
        %1190 = vmatpush1.bf16.msra.mxu0 %v870
        %1191 = vmatprep.subr.bf16.mxu0 %v875
        %1192 = vmatpush1.bf16.msra.mxu0 %v874
        %1193 = vmatprep.subr.bf16.mxu0 %v879
        %1194 = vmatpush1.bf16.msra.mxu0 %v878
        %1195 = vmatprep.subr.bf16.mxu0 %v883
        %1196 = vmatpush1.bf16.msra.mxu0 %v882
        %1197 = vmatprep.subr.bf16.mxu0 %v887
        %1198 = vmatpush1.bf16.msra.mxu0 %v886
        %1199 = vmatprep.subr.bf16.mxu0 %v891
        %1200 = vmatpush1.bf16.msra.mxu0 %v890
        %1201 = vmatprep.subr.bf16.mxu0 %v895
        %1202 = vmatpush1.bf16.msra.mxu0 %v894
        %1203 = vmatprep.subr.bf16.mxu0 %v899
        %1204 = vmatpush1.bf16.msra.mxu0 %v898
        %1205 = vmatprep.subr.bf16.mxu0 %v903
        %1206 = vmatpush1.bf16.msra.mxu0 %v902
        %1207 = vmatprep.subr.bf16.mxu0 %v907
        %1208 = vmatpush1.bf16.msra.mxu0 %v906
        %1209 = vmatprep.subr.bf16.mxu0 %v911
        %1210 = vmatpush1.bf16.msra.mxu0 %v910
        %1211 = vmatprep.subr.bf16.mxu0 %v915
        %1212 = vmatpush1.bf16.msra.mxu0 %v914
        %1213 = vmatprep.subr.bf16.mxu0 %v919
        %1214 = vmatpush1.bf16.msra.mxu0 %v918
        %1215 = vmatprep.subr.bf16.mxu0 %v923
        %1216 = vmatpush1.bf16.msra.mxu0 %v922
        %1217 = vmatprep.subr.bf16.mxu0 %v927
        %1218 = vmatpush1.bf16.msra.mxu0 %v926
        %1219 = vmatprep.subr.bf16.mxu0 %v931
        %1220 = vmatpush1.bf16.msra.mxu0 %v930
        %1221 = vmatprep.mubr.bf16.mxu0 %v415
        %1222 = vmatmul.mubr.bf16.gmra.mrb[0].mxu0 %v414
        %v1223 = vpop.f32.mrb[0].mxu0
        %v1224 = vadd.f32 %v1181, %v1223
        %v1225 = vpop.f32.mrb[0].mxu0
        %v1226 = vadd.f32 %v1183, %v1225
        %v1227 = vpop.f32.mrb[0].mxu0
        %v1228 = vadd.f32 %v1185, %v1227
        %v1229 = vpop.f32.mrb[0].mxu0
        %v1230 = vadd.f32 %v1187, %v1229
        %1231 = vdwg.mxu0
        %1232 = vst [vmem:[#allocation2 + $0x20] sm:$0xff] %v1138
        %1233 = vst [vmem:[#allocation2 + $0x28] sm:$0xff] %v1140
        %1234 = vst [vmem:[#allocation2 + $0x30] sm:$0xff] %v1224
        %1235 = vst [vmem:[#allocation2 + $0x38] sm:$0xff] %v1226
        %1236 = vst [vmem:[#allocation2 + $0x40] sm:$0xff] %v1142
        %1237 = vst [vmem:[#allocation2 + $0x48] sm:$0xff] %v1144
        %1238 = vst [vmem:[#allocation2 + $0x50] sm:$0xff] %v1228
        %1239 = vst [vmem:[#allocation2 + $0x58] sm:$0xff] %v1230
        %v1240 = vld [vmem:[#allocation2 + $0x20] sm:$0xff]
        %v1241 = vld [vmem:[#allocation2 + $0x40] sm:$0xff]
        %v1242 = vld [vmem:[#allocation2 + $0x8] sm:$0x80]
        %v1243 = vld [vmem:[#allocation2 + $0x28] sm:$0xff]
        %v1244 = vld [vmem:[#allocation2 + $0x48] sm:$0x7f]
        %vm1248 = vcmask 1040384
        %v1249 = vrot.slane %v1242, 7
        %v1250 = vrot.slane %v1243, 7
        %v1251 = vsel %vm1248, %v1249, %v1250
        %v1252 = vrot.slane %v1244, 7
        %v1253 = vsel %vm1248, %v1250, %v1252
        %v1256 = vadd.f32 %v1240, %v1251
        %v1257 = vadd.f32 %v1241, %v1253
        %v1258 = vld [vmem:[#allocation2 + $0x10] sm:$0xc0]
        %v1259 = vld [vmem:[#allocation2 + $0x30] sm:$0xff]
        %v1260 = vld [vmem:[#allocation2 + $0x50] sm:$0x3f]
        %vm1264 = vcmask 1041408
        %v1265 = vrot.slane %v1258, 6
        %v1266 = vrot.slane %v1259, 6
        %v1267 = vsel %vm1264, %v1265, %v1266
        %v1268 = vrot.slane %v1260, 6
        %v1269 = vsel %vm1264, %v1266, %v1268
        %v1272 = vadd.f32 %v1256, %v1267
        %v1273 = vadd.f32 %v1257, %v1269
        %v1274 = vld [vmem:[#allocation2 + $0x18] sm:$0xe0]
        %v1275 = vld [vmem:[#allocation2 + $0x38] sm:$0xff]
        %v1276 = vld [vmem:[#allocation2 + $0x58] sm:$0x1f]
        %vm1280 = vcmask 1042432
        %v1281 = vrot.slane %v1274, 5
        %v1282 = vrot.slane %v1275, 5
        %v1283 = vsel %vm1280, %v1281, %v1282
        %v1284 = vrot.slane %v1276, 5
        %v1285 = vsel %vm1280, %v1282, %v1284
        %v1288 = vadd.f32 %v1272, %v1283
        %v1289 = vadd.f32 %v1273, %v1285
        %v1290 = vld [vmem:[#allocation8] sm:$0xff]
        %v1291 = vld [vmem:[#allocation8 + $0x8] sm:$0xff]
        %v1292 = vmul.f32 %v1288, %v1290
        %v1293 = vmul.f32 %v1289, %v1291
        %1294 = vst [vmem:[%s244] sm:$0xff] %v1292
        %1295 = vst [vmem:[%s244 + $0x8] sm:$0xff] %v1293
        %s1296 = sand.u32 %s118, 1
        %s1297 = scalar_lea.sflag [#allocation5], %s1296
        %s1298 = sand.u32 %s118, 1
        %s1299 = smul.addr %s1298, 16
        %s1300 = scalar_lea.vmem [#allocation9], %s1299
        // Predicated region
        $region53: #{tpu_custom_call.1} parent=31 // pred_check
          %p1301 = pneg %p128
        $region54: #{tpu_custom_call.1} parent=31 // pred_check_branch
          %1303 = sbr.rel (%p1301) target = $region56
        $region55: #{tpu_custom_call.1} parent=31 // pred_region
          %s1304 = smul.u32 2, %s26
          %s1306 = ssub.s32 256, 256
          %1307 = vsyncadd %s1297, %s1306
          %s1308 = smul.addr %s25, 2
          %s1309 = sadd.s32 %s1304, %s1308
          %s1310 = smul.addr %s1309, 128
          %s1311 = scalar_lea.hbm %s3, %s1310
          %s1312 = sshll.u32 %s1300, 4
          %s1313 = int_to_ptr.vmem [resolvable:$true] %s1312
          %1318 = dma.vmem_to_hbm [thread:$0]  %s1313, 256, %s1311, %s1297, 128, 128, 8
        $region56: #{tpu_custom_call.1} parent=31 // pred_fallthru
          _
      $region32: #{tpu_custom_call.1} parent=5 // pred_fallthru
        _
      %p1319 = scmp.le.s32.totalorder 2, %s16
      // Predicated region
      $region57: #{tpu_custom_call.1} parent=5 // pred_check
        %p1320 = pneg %p1319
      $region58: #{tpu_custom_call.1} parent=5 // pred_check_branch
        %1322 = sbr.rel (%p1320) target = $region60
      $region59: #{tpu_custom_call.1} parent=5 // pred_region
        %s1323 = ssub.s32 %s16, 2
        // Predicated region
        $region61: #{tpu_custom_call.1} parent=59 // pred_check
          %p1324 = pneg %p134
        $region62: #{tpu_custom_call.1} parent=59 // pred_check_branch
          %1326 = sbr.rel (%p1324) target = $region64
        $region63: #{tpu_custom_call.1} parent=59 // pred_region
          %s1327 = sand.u32 %s119, 1
          %s1328 = scalar_lea.sflag [#allocation5], %s1327
          %s1329 = sand.u32 %s119, 1
          %s1330 = smul.addr %s1329, 16
          %s1331 = scalar_lea.vmem [#allocation9], %s1330
          %1332 = dma.done %s1328, 256
        $region64: #{tpu_custom_call.1} parent=59 // pred_fallthru
          _
      $region60: #{tpu_custom_call.1} parent=5 // pred_fallthru
        _
    $region6: #{tpu_custom_call.1} parent=1 // loop_footer
      %s20 = sadd.s32 1, %s16
    $region7: #{tpu_custom_call.1} parent=1 // loop_footer_branch
      %15 = sbr.rel target = $region3
    $region8: #{tpu_custom_call.1} parent=1 // loop_exit
      _
    %1333 = vsyncpa [#allocation4], 1
    %s1334 = scalar_lea.sflag [#allocation4], 1
    %1335 = vsyncpa %s1334, 1
    %1336 = vsyncpa [#allocation7], 1
    %1337 = vsyncpa [#allocation5], 1
    %s1338 = scalar_lea.sflag [#allocation5], 1
    %1339 = vsyncpa %s1338, 1

</llo_original>
